<compile_context>
chip_gen: v7x
topology: tpu7x:2x2x1
jax: 0.10.0
libtpu: 0.0.40
codegen_flags: <defaults>
</compile_context>

<pallas_src>
import jax
import jax.numpy as jnp
import numpy as np
from jax.experimental import pallas as pl
from jax.experimental.pallas import tpu as pltpu

# ---- "config" (synthetic, deterministic) ------------------------------------
HIDDEN = 32
SEQ = 8
BATCH = 2
LN_EPS = 1e-6                 # T5LayerNorm epsilon
SIGMOID_MASK_SCALE = -10.0    # config.sigmoid_mask_scale
GATE_LAYER_NORM = True        # config.gate_layer_norm

_LANES = 128
_SUBLANES = 8
_MAX_BLOCK_ROWS = 32768       # amortization of ~0.35us/step saturates well before this


def _round_up(x, m):
    return ((x + m - 1) // m) * m


def _make_kernel(sigmoid_mask_scale, ln_eps, ff_bias, has_layer_norm, hidden_size):
    # NOTE: scale / eps / bias are baked in as immediates; changing them recompiles.
    inv_h = 1.0 / float(hidden_size)

    def kernel(h_ref, ids_ref, wc_ref, gate_ref, logits_ref):
        # One XLU transpose up front; everything after runs lane-dense and the
        # per-row results are born on the lane axis (no output relayout needed).
        ht = jnp.transpose(h_ref[...].astype(jnp.float32))          # (H, TR)
        wc = wc_ref[...]                                             # (H, 1) = ln_w*ff_w

        # Fused T5LayerNorm + Linear(H -> 1); normalized h never materialized.
        dot = jnp.sum(ht * wc, axis=0, keepdims=True)                # (1, TR)
        if has_layer_norm:
            ssq = jnp.sum(ht * ht, axis=0, keepdims=True) * inv_h    # mean(h^2)
            dot = dot * jax.lax.rsqrt(ssq + ln_eps)
        logits_row = dot + ff_bias                                   # (1, TR)

        # ScaledSigmoid + pad-token override (all lane-wise independent).
        gate_row = sigmoid_mask_scale * jax.nn.sigmoid(-logits_row)
        gate_row = jnp.where(ids_ref[...] == 0,
                             jnp.float32(sigmoid_mask_scale), gate_row)

        gate_ref[...] = gate_row.astype(gate_ref.dtype)
        logits_ref[...] = logits_row.astype(logits_ref.dtype)

    return kernel


def _vmem_plan(R, H, in_itemsize):
    """Pick (block_rows, vmem_limit_bytes) with lane-padding-aware VMEM accounting."""
    # Per-generation budget: v5e/v6e have 128 MiB VMEM -> allow a 64 MiB scoped
    # limit; v7x has only 64 MiB -> stay under its 32 MiB scoped default.
    try:
        vmem_cap = int(pltpu.get_tpu_info().vmem_capacity_bytes)
    except Exception:                      # conservative fallback (assume v7x-sized)
        vmem_cap = 64 * 1024 * 1024
    if vmem_cap >= 100 * 1024 * 1024:      # v5e / v6e
        vmem_limit = 64 * 1024 * 1024
        budget = 44 * 1024 * 1024
    else:                                  # v7x
        vmem_limit = 32 * 1024 * 1024
        budget = 22 * 1024 * 1024

    # VMEM bytes per row, padding included:
    #   hidden block     : 2 buffers x round_up(H, 128) lanes x itemsize
    #   ids + 2 outputs  : (1, tr) blocks pad to 8 sublanes -> 3 x 2 bufs x 8 x 4 B
    #   in-kernel f32 temporaries (ht + products) ~ 3 x round_up(H, 8) x 4 B
    per_row = (2 * _round_up(H, _LANES) * in_itemsize
               + 3 * 2 * _SUBLANES * 4
               + 3 * _round_up(H, _SUBLANES) * 4)
    rows_cap = max(_LANES, (budget // per_row) // _LANES * _LANES)
    rows_cap = min(rows_cap, _MAX_BLOCK_ROWS)

    if R <= min(rows_cap, 1024):
        # Single full-array block: no padding, no partial tiles, trivial grid.
        return R, vmem_limit

    # Large inputs: 128-aligned tiles, >= 4 grid steps so both v7x TCs get work
    # under dimension_semantics=("parallel",). grid = cdiv(R, tr): the partial tail
    # block is masked by Pallas (no jnp.pad copy of the hidden tensor).
    tr = min(rows_cap, _round_up(pl.cdiv(R, 4), _LANES))
    return max(_LANES, tr), vmem_limit


def sigmoid_delete_gate(hidden_states, input_ids, ln_weight, ff_weight, ff_bias,
                        *, sigmoid_mask_scale=SIGMOID_MASK_SCALE,
                        ln_eps=LN_EPS, has_layer_norm=GATE_LAYER_NORM):
    """hidden_states: (B, S, H) f32/bf16; input_ids: (B, S) int; ln_weight: (H,) f32;
    ff_weight: (1, H) f32; ff_bias: python float.
    Returns (gate_values (B,S,1), delete_gate_logits (B,S,1))."""
    B, S, H = hidden_states.shape
    R = B * S

    # Flatten batch*seq into rows (free, row-major contiguous). bf16 hidden is
    # streamed as-is (the kernel upcasts in-register).
    h2 = hidden_states.reshape(R, H)
    ids2 = input_ids.reshape(1, R).astype(jnp.int32)

    # Fold the RMS-norm weight into the linear weight once, wrapper-side; pass it
    # as an (H, 1) column so it broadcasts along lanes against the transposed block.
    ffw = ff_weight.reshape(H).astype(jnp.float32)
    if has_layer_norm:
        wc = ffw * ln_weight.reshape(H).astype(jnp.float32)
    else:
        wc = ffw
    wc = wc.reshape(H, 1)

    tr, vmem_limit = _vmem_plan(R, H, h2.dtype.itemsize)
    grid = (pl.cdiv(R, tr),)

    kernel = _make_kernel(float(sigmoid_mask_scale), float(ln_eps), float(ff_bias),
                          bool(has_layer_norm), H)

    out_shapes = (jax.ShapeDtypeStruct((1, R), jnp.float32),   # gate (lane-dense)
                  jax.ShapeDtypeStruct((1, R), jnp.float32))   # logits (lane-dense)

    cost = pl.CostEstimate(
        flops=4 * R * H,                     # two muls + two add-reductions per row
        transcendentals=R,                   # one sigmoid per row
        bytes_accessed=R * H * h2.dtype.itemsize + 3 * R * 4 + H * 4)

    gate2, logits2 = pl.pallas_call(
        kernel,
        out_shape=out_shapes,
        grid=grid,
        in_specs=[
            pl.BlockSpec((tr, H), lambda i: (i, 0)),    # hidden rows (streamed)
            pl.BlockSpec((1, tr), lambda i: (0, i)),    # input_ids (lane-major)
            pl.BlockSpec((H, 1), lambda i: (0, 0)),     # fused weight, fetched once
        ],
        out_specs=[
            pl.BlockSpec((1, tr), lambda i: (0, i)),    # gate_values
            pl.BlockSpec((1, tr), lambda i: (0, i)),    # delete_gate_logits
        ],
        compiler_params=pltpu.CompilerParams(
            dimension_semantics=("parallel",),          # shard row tiles across v7x TCs
            vmem_limit_bytes=vmem_limit),
        cost_estimate=cost,
    )(h2, ids2, wc)

    gate = gate2[0].reshape(B, S, 1)
    logits = logits2[0].reshape(B, S, 1)
    return gate, logits


def _reference(hidden_states, input_ids, ln_weight, ff_weight, ff_bias,
               *, sigmoid_mask_scale=SIGMOID_MASK_SCALE, ln_eps=LN_EPS,
               has_layer_norm=GATE_LAYER_NORM):
    h = hidden_states.astype(jnp.float32)
    if has_layer_norm:
        var = jnp.mean(h * h, axis=-1, keepdims=True)
        h = h * jax.lax.rsqrt(var + ln_eps) * ln_weight
    logits = jnp.sum(h * ff_weight[0], axis=-1, keepdims=True) + ff_bias
    gate = sigmoid_mask_scale * jax.nn.sigmoid(-logits)
    gate = jnp.where((input_ids == 0)[..., None],
                     jnp.float32(sigmoid_mask_scale), gate)
    return gate, logits


if __name__ == "__main__":
    key = jax.random.PRNGKey(0)
    k_h, k_w, k_ids = jax.random.split(key, 3)

    # inputs
    hidden_states = jax.random.normal(k_h, (BATCH, SEQ, HIDDEN), dtype=jnp.float32)
    input_ids = jax.random.randint(k_ids, (BATCH, SEQ), 1, 100, dtype=jnp.int32)
    input_ids = input_ids.at[:, -2:].set(0)   # ensure some padding tokens

    # parameters (deterministic synthetic init, matching the module's __init__)
    ln_weight = jnp.ones((HIDDEN,), dtype=jnp.float32)            # T5LayerNorm weight
    bound = float(np.sqrt(6.0 / (HIDDEN + 1)))                    # xavier_uniform_
    ff_weight = jax.random.uniform(k_w, (1, HIDDEN), minval=-bound, maxval=bound,
                                   dtype=jnp.float32)
    ff_bias = 1.0                                                 # bias.data.fill_(1)

    gate_values, delete_gate_logits = sigmoid_delete_gate(
        hidden_states, input_ids, ln_weight, ff_weight, ff_bias)
    jax.block_until_ready((gate_values, delete_gate_logits))

    # correctness check against pure-JAX reference
    ref_gate, ref_logits = _reference(hidden_states, input_ids, ln_weight,
                                      ff_weight, ff_bias)
    np.testing.assert_allclose(np.asarray(gate_values), np.asarray(ref_gate),
                               rtol=1e-5, atol=1e-5)
    np.testing.assert_allclose(np.asarray(delete_gate_logits), np.asarray(ref_logits),
                               rtol=1e-5, atol=1e-5)

    print("KERNEL_OK")
</pallas_src>

<mosaic_0001>
module attributes {stable_mosaic.version = 11 : i64} {
  func.func @kernel(%arg0: i32, %arg1: memref<16x32xf32, #tpu.memory_space<vmem>>, %arg2: memref<1x16xi32, #tpu.memory_space<vmem>>, %arg3: memref<32x1xf32, #tpu.memory_space<vmem>>, %arg4: memref<1x16xf32, #tpu.memory_space<vmem>>, %arg5: memref<1x16xf32, #tpu.memory_space<vmem>>) attributes {dimension_semantics = [#tpu.dimension_semantics<parallel>], iteration_bounds = array<i64: 1>, scalar_prefetch = 0 : i64, scratch_operands = 0 : i64, tpu.core_type = #tpu.core_type<tc>, window_params = [{transform_indices = @transform_0, window_bounds = array<i64: 16, 32>}, {transform_indices = @transform_1, window_bounds = array<i64: 1, 16>}, {pipeline_mode = #tpu.pipeline_mode<synchronous>, transform_indices = @transform_2, window_bounds = array<i64: 32, 1>}, {transform_indices = @transform_3, window_bounds = array<i64: 1, 16>}, {transform_indices = @transform_4, window_bounds = array<i64: 1, 16>}]} {
    %c0 = arith.constant 0 : index
    %c0_0 = arith.constant 0 : index
    %0 = vector.load %arg1[%c0, %c0_0] : memref<16x32xf32, #tpu.memory_space<vmem>>, vector<16x32xf32>
    %1 = tpu.transpose %0, [1, 0] : vector<16x32xf32> -> vector<32x16xf32>
    %c0_1 = arith.constant 0 : index
    %c0_2 = arith.constant 0 : index
    %2 = vector.load %arg3[%c0_1, %c0_2] : memref<32x1xf32, #tpu.memory_space<vmem>>, vector<32x1xf32>
    %3 = vector.broadcast %2 : vector<32x1xf32> to vector<32x16xf32>
    %4 = arith.mulf %1, %3 : vector<32x16xf32>
    %cst = arith.constant dense<0.000000e+00> : vector<16xf32>
    %5 = vector.multi_reduction <add>, %4, %cst [0] : vector<32x16xf32> to vector<16xf32>
    %6 = vector.shape_cast %5 : vector<16xf32> to vector<1x16xf32>
    %7 = arith.mulf %1, %1 : vector<32x16xf32>
    %cst_3 = arith.constant dense<0.000000e+00> : vector<16xf32>
    %8 = vector.multi_reduction <add>, %7, %cst_3 [0] : vector<32x16xf32> to vector<16xf32>
    %9 = vector.shape_cast %8 : vector<16xf32> to vector<1x16xf32>
    %cst_4 = arith.constant 3.125000e-02 : f32
    %10 = vector.broadcast %cst_4 : f32 to vector<1x16xf32>
    %11 = arith.mulf %9, %10 : vector<1x16xf32>
    %cst_5 = arith.constant 9.99999997E-7 : f32
    %12 = vector.broadcast %cst_5 : f32 to vector<1x16xf32>
    %13 = arith.addf %11, %12 : vector<1x16xf32>
    %14 = math.rsqrt %13 : vector<1x16xf32>
    %15 = arith.mulf %6, %14 : vector<1x16xf32>
    %cst_6 = arith.constant 1.000000e+00 : f32
    %16 = vector.broadcast %cst_6 : f32 to vector<1x16xf32>
    %17 = arith.addf %15, %16 : vector<1x16xf32>
    %cst_7 = arith.constant 0.000000e+00 : f32
    %18 = vector.broadcast %cst_7 : f32 to vector<1x16xf32>
    %19 = arith.subf %18, %17 : vector<1x16xf32>
    %20 = arith.negf %19 : vector<1x16xf32>
    %21 = math.exp %20 : vector<1x16xf32>
    %cst_8 = arith.constant 1.000000e+00 : f32
    %22 = vector.broadcast %cst_8 : f32 to vector<1x16xf32>
    %23 = arith.addf %22, %21 : vector<1x16xf32>
    %24 = arith.divf %22, %23 : vector<1x16xf32>
    %cst_9 = arith.constant -1.000000e+01 : f32
    %25 = vector.broadcast %cst_9 : f32 to vector<1x16xf32>
    %26 = arith.mulf %25, %24 : vector<1x16xf32>
    %c0_10 = arith.constant 0 : index
    %c0_11 = arith.constant 0 : index
    %27 = vector.load %arg2[%c0_10, %c0_11] : memref<1x16xi32, #tpu.memory_space<vmem>>, vector<1x16xi32>
    %c0_i32 = arith.constant 0 : i32
    %28 = vector.broadcast %c0_i32 : i32 to vector<1x16xi32>
    %29 = arith.cmpi eq, %27, %28 : vector<1x16xi32>
    %cst_12 = arith.constant -1.000000e+01 : f32
    %30 = vector.broadcast %cst_12 : f32 to vector<1x16xf32>
    %31 = arith.select %29, %30, %26 : vector<1x16xi1>, vector<1x16xf32>
    %c0_13 = arith.constant 0 : index
    %c0_14 = arith.constant 0 : index
    %32 = vector.load %arg4[%c0_13, %c0_14] : memref<1x16xf32, #tpu.memory_space<vmem>>, vector<1x16xf32>
    tpu.vector_store %arg4[%c0_13, %c0_14], %31 {strides = array<i32>} : memref<1x16xf32, #tpu.memory_space<vmem>>, vector<1x16xf32>,
    %c0_15 = arith.constant 0 : index
    %c0_16 = arith.constant 0 : index
    %33 = vector.load %arg5[%c0_15, %c0_16] : memref<1x16xf32, #tpu.memory_space<vmem>>, vector<1x16xf32>
    tpu.vector_store %arg5[%c0_15, %c0_16], %17 {strides = array<i32>} : memref<1x16xf32, #tpu.memory_space<vmem>>, vector<1x16xf32>,
    return
  }
  func.func @transform_0(%arg0: i32) -> (i32, i32) {
    %c0_i32 = arith.constant 0 : i32
    %c0_i32_0 = arith.constant 0 : i32
    return %arg0, %c0_i32 : i32, i32
  }
  func.func @transform_1(%arg0: i32) -> (i32, i32) {
    %c0_i32 = arith.constant 0 : i32
    %c0_i32_0 = arith.constant 0 : i32
    return %c0_i32, %arg0 : i32, i32
  }
  func.func @transform_2(%arg0: i32) -> (i32, i32) {
    %c0_i32 = arith.constant 0 : i32
    %c0_i32_0 = arith.constant 0 : i32
    %c0_i32_1 = arith.constant 0 : i32
    return %c0_i32, %c0_i32_0 : i32, i32
  }
  func.func @transform_3(%arg0: i32) -> (i32, i32) {
    %c0_i32 = arith.constant 0 : i32
    %c0_i32_0 = arith.constant 0 : i32
    return %c0_i32, %arg0 : i32, i32
  }
  func.func @transform_4(%arg0: i32) -> (i32, i32) {
    %c0_i32 = arith.constant 0 : i32
    %c0_i32_0 = arith.constant 0 : i32
    return %c0_i32, %arg0 : i32, i32
  }
}

</mosaic_0001>

<llo_original>
// kernel: tpu_custom_call.1
$region0: #{tpu_custom_call.1}
  #allocation0 [shape = 'u32[]', space=smem, size = 0x4, offset = 0x4, fixed_abs, tag = 'smem constant byte address 0x4 - core index']
  #allocation1 [shape = 'u32[144,128]{1,0:T(1,128)}', space=vmem, size = 0x12000, scoped, tag = 'internal scratch']
  %s0 = inlined_call_operand.vmem [shape: f32[16,32], index: 0, kind: input, shape index: {}]
  %s1 = inlined_call_operand.vmem [shape: s32[1,16], index: 1, kind: input, shape index: {}]
  %s2 = inlined_call_operand.vmem [shape: f32[32,1], index: 2, kind: input, shape index: {}]
  %s3 = inlined_call_operand.hbm [shape: f32[1,16], index: 3, kind: output, shape index: {0}]
  %s4 = inlined_call_operand.hbm [shape: f32[1,16], index: 4, kind: output, shape index: {1}]
  %5 = xla_tuple %s3, %s4
  %s6 = sld [smem:[#allocation0]]
  $region30: #{tpu_custom_call.1} parent=0
    _
  %s8 = ssub.s32 1, %s6
  %s9 = scalar_select 0, %s8, %s6
  $region1: #{tpu_custom_call.1} parent=0
    #allocation2 [shape = 'u8[512]{0}', space=vmem, size = 0x400, scoped, tag = 'output window, operand 0, single buffered']
    #allocation3 [shape = 's32[1]{0}', space=sflag, size = 0x4, scoped, tag = 'scoped memory for tpu_custom_call.1']
    #allocation4 [shape = 'u8[512]{0}', space=vmem, size = 0x400, scoped, tag = 'output window, operand 1, single buffered']
    #allocation5 [shape = 's32[1]{0}', space=sflag, size = 0x4, scoped, tag = 'scoped memory for tpu_custom_call.1']
    %10 = vsyncpa [#allocation3], 0
    %11 = vsyncpa [#allocation5], 0
    // Predicated region
    $region2: #{tpu_custom_call.1} parent=1 // pred_check
      _
    $region3: #{tpu_custom_call.1} parent=1 // pred_check_branch
      %13 = sbr.rel (0) target = $region5
    $region4: #{tpu_custom_call.1} parent=1 // pred_region
      _
    $region5: #{tpu_custom_call.1} parent=1 // pred_fallthru
      _
    // Predicated region
    $region6: #{tpu_custom_call.1} parent=1 // pred_check
      _
    $region7: #{tpu_custom_call.1} parent=1 // pred_check_branch
      %15 = sbr.rel (0) target = $region9
    $region8: #{tpu_custom_call.1} parent=1 // pred_region
      _
    $region9: #{tpu_custom_call.1} parent=1 // pred_fallthru
      _
    // Predicated region
    $region10: #{tpu_custom_call.1} parent=1 // pred_check
      _
    $region11: #{tpu_custom_call.1} parent=1 // pred_check_branch
      %17 = sbr.rel (0) target = $region13
    $region12: #{tpu_custom_call.1} parent=1 // pred_region
      _
    $region13: #{tpu_custom_call.1} parent=1 // pred_fallthru
      _
    %v18 = vld [vmem:[%s0] sm:$0xff]
    %v19 = vld [vmem:[%s0 + $0x8] sm:$0xff]
    %20 = vxpose.xlu0.b32.start [1/16] %v18, 128
    %21 = vxpose.xlu0.b32.cont [2/16] %v19, 128
    %22 = vxpose.xlu0.b32.cont [3/16] 0.0, 128
    %23 = vxpose.xlu0.b32.cont [4/16] 0.0, 128
    %24 = vxpose.xlu0.b32.cont [5/16] 0.0, 128
    %25 = vxpose.xlu0.b32.cont [6/16] 0.0, 128
    %26 = vxpose.xlu0.b32.cont [7/16] 0.0, 128
    %27 = vxpose.xlu0.b32.cont [8/16] 0.0, 128
    %28 = vxpose.xlu0.b32.cont [9/16] 0.0, 128
    %29 = vxpose.xlu0.b32.cont [10/16] 0.0, 128
    %30 = vxpose.xlu0.b32.cont [11/16] 0.0, 128
    %31 = vxpose.xlu0.b32.cont [12/16] 0.0, 128
    %32 = vxpose.xlu0.b32.cont [13/16] 0.0, 128
    %33 = vxpose.xlu0.b32.cont [14/16] 0.0, 128
    %34 = vxpose.xlu0.b32.cont [15/16] 0.0, 128
    %35 = vxpose.xlu0.b32.end [16/16] 0.0, 128
    %v36 = vpop.trf.xlu0
    %v37 = vpop.trf.xlu0
    %v38 = vpop.trf.xlu0
    %v39 = vpop.trf.xlu0
    %v40 = vpop.trf.xlu0
    %v41 = vpop.trf.xlu0
    %v42 = vpop.trf.xlu0
    %v43 = vpop.trf.xlu0
    %v44 = vpop.trf.xlu0
    %v45 = vpop.trf.xlu0
    %v46 = vpop.trf.xlu0
    %v47 = vpop.trf.xlu0
    %v48 = vpop.trf.xlu0
    %v49 = vpop.trf.xlu0
    %v50 = vpop.trf.xlu0
    %v51 = vpop.trf.xlu0
    %v52 = vld [vmem:[%s2] sm:$0xff]
    %v53 = vld [vmem:[%s2 + $0x8] sm:$0xff]
    %v54 = vld [vmem:[%s2 + $0x10] sm:$0xff]
    %v55 = vld [vmem:[%s2 + $0x18] sm:$0xff]
    %57 = vset.pattern.permute.xlu0 0
    %58 = vperm.xlu0 %57, %v52
    %v59 = vpop.permute.xlu0 %58
    %62 = vset.pattern.permute.xlu0 0
    %63 = vperm.xlu0 %62, %v53
    %v64 = vpop.permute.xlu0 %63
    %67 = vset.pattern.permute.xlu0 0
    %68 = vperm.xlu0 %67, %v54
    %v69 = vpop.permute.xlu0 %68
    %72 = vset.pattern.permute.xlu0 0
    %73 = vperm.xlu0 %72, %v55
    %v74 = vpop.permute.xlu0 %73
    %v76 = vmul.f32 %v36, %v59
    %v77 = vmul.f32 %v37, %v64
    %v78 = vmul.f32 %v38, %v69
    %v79 = vmul.f32 %v39, %v74
    %vm80 = vcmask 130048
    %v81 = vsel %vm80, %v76, 0.0
    %v82 = vsel %vm80, %v77, 0.0
    %v83 = vadd.f32 %v81, %v82
    %v84 = vsel %vm80, %v78, 0.0
    %v85 = vadd.f32 %v83, %v84
    %v86 = vsel %vm80, %v79, 0.0
    %v87 = vadd.f32 %v85, %v86
    %v88 = vrot.slane %v87, 4
    %v89 = vadd.f32 %v87, %v88
    %v90 = vrot.slane %v89, 2
    %v91 = vadd.f32 %v89, %v90
    %v92 = vrot.slane %v91, 1
    %v93 = vadd.f32 %v91, %v92
    %v94 = vmul.f32 %v36, %v36
    %v95 = vmul.f32 %v37, %v37
    %v96 = vmul.f32 %v38, %v38
    %v97 = vmul.f32 %v39, %v39
    %v98 = vsel %vm80, %v94, 0.0
    %v99 = vsel %vm80, %v95, 0.0
    %v100 = vadd.f32 %v98, %v99
    %v101 = vsel %vm80, %v96, 0.0
    %v102 = vadd.f32 %v100, %v101
    %v103 = vsel %vm80, %v97, 0.0
    %v104 = vadd.f32 %v102, %v103
    %v105 = vrot.slane %v104, 4
    %v106 = vadd.f32 %v104, %v105
    %v107 = vrot.slane %v106, 2
    %v108 = vadd.f32 %v106, %v107
    %v109 = vrot.slane %v108, 1
    %v110 = vadd.f32 %v108, %v109
    %v111 = vmul.f32 %v110, 0.03125
    %v112 = vadd.f32 %v111, 1e-06
    %v113 = vrsqrt.pop %v112
    %v114 = vmul.f32 %v93, %v113
    %v115 = vadd.f32 %v114, 1.0
    %v116 = vsub.f32 0.0, %v115
    %v117 = vxor.u32 %v116, 2147483648
    %v118 = vmul.f32 %v117, 1.442695
    %v119 = vpow.pop %v118
    %v120 = vadd.f32 %v119, 1.0
    %v121 = vrcp.pop %v120
    %v122 = vmul.f32 1.0, %v121
    %v123 = vmul.f32 %v122, -10.0
    %v124 = vld [vmem:[%s1] sm:$0x1]
    %vm125 = vcmp.eq.s32.totalorder %v124, 0
    %v126 = vsel %vm125, -10.0, %v123
    %vm127 = vcmask 122880
    %128 = vst.msk [vmem:[#allocation2] sm:$0x1] %vm127, %v126
    %129 = vst.msk [vmem:[#allocation4] sm:$0x1] %vm127, %v115
    // Predicated region
    $region14: #{tpu_custom_call.1} parent=1 // pred_check
      _
    $region15: #{tpu_custom_call.1} parent=1 // pred_check_branch
      %131 = sbr.rel (0) target = $region17
    $region16: #{tpu_custom_call.1} parent=1 // pred_region
      %s133 = ssub.s32 16, 16
      %134 = vsyncadd [#allocation3], %s133
      %s136 = sshll.u32 [#allocation2], 4
      %s137 = int_to_ptr.vmem [resolvable:$true] %s136
      %139 = dma.vmem_to_hbm [thread:$0]  %s137, 16, %s3, [#allocation3]
    $region17: #{tpu_custom_call.1} parent=1 // pred_fallthru
      _
    // Predicated region
    $region18: #{tpu_custom_call.1} parent=1 // pred_check
      _
    $region19: #{tpu_custom_call.1} parent=1 // pred_check_branch
      %141 = sbr.rel (0) target = $region21
    $region20: #{tpu_custom_call.1} parent=1 // pred_region
      %s143 = ssub.s32 16, 16
      %144 = vsyncadd [#allocation5], %s143
      %s146 = sshll.u32 [#allocation4], 4
      %s147 = int_to_ptr.vmem [resolvable:$true] %s146
      %149 = dma.vmem_to_hbm [thread:$0]  %s147, 16, %s4, [#allocation5]
    $region21: #{tpu_custom_call.1} parent=1 // pred_fallthru
      _
    // Predicated region
    $region22: #{tpu_custom_call.1} parent=1 // pred_check
      _
    $region23: #{tpu_custom_call.1} parent=1 // pred_check_branch
      %151 = sbr.rel (0) target = $region25
    $region24: #{tpu_custom_call.1} parent=1 // pred_region
      %152 = dma.done [#allocation3], 16
    $region25: #{tpu_custom_call.1} parent=1 // pred_fallthru
      _
    // Predicated region
    $region26: #{tpu_custom_call.1} parent=1 // pred_check
      _
    $region27: #{tpu_custom_call.1} parent=1 // pred_check_branch
      %154 = sbr.rel (0) target = $region29
    $region28: #{tpu_custom_call.1} parent=1 // pred_region
      %155 = dma.done [#allocation5], 16
    $region29: #{tpu_custom_call.1} parent=1 // pred_fallthru
      _
    %156 = vsyncpa [#allocation3], 1
    %157 = vsyncpa [#allocation5], 1

</llo_original>
